<compile_context>
chip_gen: v7x
topology: tpu7x:2x2x1
jax: 0.10.0
libtpu: 0.0.40
codegen_flags: <defaults>
</compile_context>

<pallas_src>
import functools

import jax
import jax.numpy as jnp
from jax.experimental import pallas as pl
from jax.experimental.pallas import tpu as pltpu

D_IN, D_H1, D_H2, D_H3, D_H4, D_OUT = 768, 1024, 128, 64, 16, 1
_HP = jax.lax.Precision.HIGHEST


def mlp_kernel(x_ref,   # (tile_b, 768) f32
               w_ref,   # (768, 1)      f32  (w1@w2@w3@w4@w5 folded on host)
               b_ref,   # (1, 1)        f32  (folded bias)
               o_ref):  # (tile_b, 1)   f32
    # Whole network is affine (Dropout = identity at inference), so the forward
    # collapses to a single GEMV; compute is fully hidden under the x DMA.
    o_ref[...] = (jnp.dot(x_ref[...], w_ref[...],
                          preferred_element_type=jnp.float32)
                  + b_ref[...]).astype(o_ref.dtype)


def fold_params(params):
    """Fold the five affine layers into one (768, 1) weight and (1, 1) bias."""
    (w_all, b_all) = params[0]
    for (w, b) in params[1:]:
        w_all = jnp.dot(w_all, w, precision=_HP)
        b_all = jnp.dot(b_all, w, precision=_HP) + b
    return w_all, b_all


def _round_up(n, m):
    return ((n + m - 1) // m) * m


@functools.partial(jax.jit, static_argnames=("tile_b",))
def mlp_forward(x, params, tile_b=1024):
    """x: (B, 768) f32.  params: list of 5 (w, b); w: (in, out), b: (1, out)."""
    B = x.shape[0]
    w_all, b_all = fold_params(params)            # (768, 1), (1, 1), f32

    # Clamp the tile to the (8-aligned) batch so tiny batches stay exact; for
    # larger non-divisible batches the cdiv grid's overhang rows are masked on
    # store, so no host-side padding pass is needed.
    tb = min(tile_b, _round_up(B, 8))
    n_tiles = pl.cdiv(B, tb)

    full = lambda a: pl.BlockSpec(a.shape, lambda i: (0, 0))
    return pl.pallas_call(
        mlp_kernel,
        out_shape=jax.ShapeDtypeStruct((B, D_OUT), jnp.float32),
        grid_spec=pltpu.PrefetchScalarGridSpec(
            num_scalar_prefetch=0,
            grid=(n_tiles,),
            in_specs=[
                pl.BlockSpec((tb, D_IN), lambda i: (i, 0)),
                full(w_all),
                full(b_all),
            ],
            out_specs=pl.BlockSpec((tb, D_OUT), lambda i: (i, 0)),
        ),
        compiler_params=pltpu.CompilerParams(
            dimension_semantics=("parallel",),     # batch tiles shard across TCs
            vmem_limit_bytes=32 * 1024 * 1024,     # headroom for tile_b up to ~4k
        ),
    )(x, w_all, b_all)


def init_params(key):
    # Deterministic synthetic init matching nn.Linear shapes (stored transposed:
    # [in, out] instead of torch's [out, in]); biases shaped (1, out).
    dims = [(D_IN, D_H1), (D_H1, D_H2), (D_H2, D_H3), (D_H3, D_H4), (D_H4, D_OUT)]
    params = []
    for (din, dout) in dims:
        key, kw, kb = jax.random.split(key, 3)
        bound = 1.0 / jnp.sqrt(din)
        w = jax.random.uniform(kw, (din, dout), jnp.float32, -bound, bound)
        b = jax.random.uniform(kb, (1, dout), jnp.float32, -bound, bound)
        params.append((w, b))
    return params


def mlp_reference_layered(x, params):
    # Pure f32 per-layer reference (dropout = identity at inference).
    h = x
    for (w, b) in params:
        h = jnp.dot(h, w, precision=_HP) + b
    return h


def mlp_reference_folded(x, params):
    # Same fold the kernel uses, evaluated on the host in full f32.
    w_all, b_all = fold_params(params)
    return jnp.dot(x, w_all, precision=_HP) + b_all


# TODO(synk): Dropout is treated as identity (inference semantics of the
# @torch.no_grad() forward); training-mode stochastic dropout (which would also
# invalidate the full affine fold) is not implemented.

if __name__ == "__main__":
    key = jax.random.PRNGKey(0)
    key, kx = jax.random.split(key)
    B = 40  # small batch, not a multiple of the default tile (exercises clamping)
    x = jax.random.normal(kx, (B, D_IN), jnp.float32)
    params = init_params(key)

    out = jax.block_until_ready(mlp_forward(x, params))
    assert out.shape == (B, D_OUT)

    ref_folded = mlp_reference_folded(x, params)
    ref_layered = mlp_reference_layered(x, params)
    assert jnp.allclose(out, ref_folded, atol=1e-3, rtol=1e-3), \
        "mismatch vs folded f32 reference"
    assert jnp.allclose(out, ref_layered, atol=1e-3, rtol=1e-3), \
        "mismatch vs per-layer f32 reference"

    # Multi-tile + batch-overhang path (grid > 1, last block partially OOB).
    out_small = jax.block_until_ready(mlp_forward(x, params, tile_b=16))
    assert jnp.allclose(out_small, ref_layered, atol=1e-3, rtol=1e-3), \
        "mismatch on multi-tile / overhang path"

    print("KERNEL_OK")
</pallas_src>

<mosaic_0001>
module attributes {stable_mosaic.version = 11 : i64} {
  func.func @mlp_kernel(%arg0: i32, %arg1: memref<40x768xf32, #tpu.memory_space<vmem>>, %arg2: memref<768x1xf32, #tpu.memory_space<vmem>>, %arg3: memref<1x1xf32, #tpu.memory_space<vmem>>, %arg4: memref<40x1xf32, #tpu.memory_space<vmem>>) attributes {dimension_semantics = [#tpu.dimension_semantics<parallel>], iteration_bounds = array<i64: 1>, scalar_prefetch = 0 : i64, scratch_operands = 0 : i64, tpu.core_type = #tpu.core_type<tc>, window_params = [{transform_indices = @transform_0, window_bounds = array<i64: 40, 768>}, {pipeline_mode = #tpu.pipeline_mode<synchronous>, transform_indices = @transform_1, window_bounds = array<i64: 768, 1>}, {pipeline_mode = #tpu.pipeline_mode<synchronous>, transform_indices = @transform_2, window_bounds = array<i64: 1, 1>}, {transform_indices = @transform_3, window_bounds = array<i64: 40, 1>}]} {
    %c0 = arith.constant 0 : index
    %c0_0 = arith.constant 0 : index
    %0 = vector.load %arg1[%c0, %c0_0] : memref<40x768xf32, #tpu.memory_space<vmem>>, vector<40x768xf32>
    %c0_1 = arith.constant 0 : index
    %c0_2 = arith.constant 0 : index
    %1 = vector.load %arg2[%c0_1, %c0_2] : memref<768x1xf32, #tpu.memory_space<vmem>>, vector<768x1xf32>
    %cst = arith.constant dense<0.000000e+00> : vector<40x1xf32>
    %2 = tpu.matmul %0, %1, %cst {dimension_numbers = #tpu.dot_dimension_numbers<[1], [0], [0], [1], [0, 0, 1, 1], [], []>} : vector<40x768xf32>, vector<768x1xf32>, vector<40x1xf32> -> vector<40x1xf32>
    %c0_3 = arith.constant 0 : index
    %c0_4 = arith.constant 0 : index
    %3 = vector.load %arg3[%c0_3, %c0_4] : memref<1x1xf32, #tpu.memory_space<vmem>>, vector<1x1xf32>
    %4 = vector.broadcast %3 : vector<1x1xf32> to vector<40x1xf32>
    %5 = arith.addf %2, %4 : vector<40x1xf32>
    %c0_5 = arith.constant 0 : index
    %c0_6 = arith.constant 0 : index
    %6 = vector.load %arg4[%c0_5, %c0_6] : memref<40x1xf32, #tpu.memory_space<vmem>>, vector<40x1xf32>
    tpu.vector_store %arg4[%c0_5, %c0_6], %5 {strides = array<i32>} : memref<40x1xf32, #tpu.memory_space<vmem>>, vector<40x1xf32>,
    return
  }
  func.func @transform_0(%arg0: i32) -> (i32, i32) {
    %c0_i32 = arith.constant 0 : i32
    %c0_i32_0 = arith.constant 0 : i32
    return %arg0, %c0_i32 : i32, i32
  }
  func.func @transform_1(%arg0: i32) -> (i32, i32) {
    %c0_i32 = arith.constant 0 : i32
    %c0_i32_0 = arith.constant 0 : i32
    %c0_i32_1 = arith.constant 0 : i32
    return %c0_i32, %c0_i32_0 : i32, i32
  }
  func.func @transform_2(%arg0: i32) -> (i32, i32) {
    %c0_i32 = arith.constant 0 : i32
    %c0_i32_0 = arith.constant 0 : i32
    %c0_i32_1 = arith.constant 0 : i32
    return %c0_i32, %c0_i32_0 : i32, i32
  }
  func.func @transform_3(%arg0: i32) -> (i32, i32) {
    %c0_i32 = arith.constant 0 : i32
    %c0_i32_0 = arith.constant 0 : i32
    return %arg0, %c0_i32 : i32, i32
  }
}

</mosaic_0001>

<llo_original>
// kernel: mlp_forward.1
$region0: #{mlp_forward.1}
  #allocation0 [shape = 'u32[]', space=smem, size = 0x4, offset = 0x4, fixed_abs, tag = 'smem constant byte address 0x4 - core index']
  #allocation1 [shape = 'u32[144,128]{1,0:T(1,128)}', space=vmem, size = 0x12000, scoped, tag = 'internal scratch']
  #allocation2 [shape = 'f32[1,1]{1,0:T(1,128)S(1)}', space=vmem, size = 0x200, scoped, tag = 'scoped memory for mlp_forward.1']
  %s0 = inlined_call_operand.vmem [shape: f32[40,768], index: 0, kind: input, shape index: {}]
  %s1 = inlined_call_operand.vmem [shape: f32[768,1], index: 1, kind: input, shape index: {}]
  %s2 = inlined_call_operand.<no memory space> [shape: f32[1,1], index: 2, kind: input, shape index: {}]
  %s3 = inlined_call_operand.vmem [shape: f32[40,1], index: 3, kind: output, shape index: {}]
  %s4 = sld [smem:[#allocation0]]
  $region22: #{mlp_forward.1} parent=0
    _
  %s6 = ssub.s32 1, %s4
  %s7 = scalar_select 0, %s6, %s4
  %v8 = vstv %s2
  %9 = vst [vmem:[#allocation2] sm:$0x1] %v8
  // Predicated region
  $region2: #{mlp_forward.1} parent=0 // pred_check
    _
  $region3: #{mlp_forward.1} parent=0 // pred_check_branch
    %11 = sbr.rel (0) target = $region5
  $region4: #{mlp_forward.1} parent=0 // pred_region
    _
  $region5: #{mlp_forward.1} parent=0 // pred_fallthru
    _
  // Predicated region
  $region6: #{mlp_forward.1} parent=0 // pred_check
    _
  $region7: #{mlp_forward.1} parent=0 // pred_check_branch
    %13 = sbr.rel (0) target = $region9
  $region8: #{mlp_forward.1} parent=0 // pred_region
    _
  $region9: #{mlp_forward.1} parent=0 // pred_fallthru
    _
  // Predicated region
  $region10: #{mlp_forward.1} parent=0 // pred_check
    _
  $region11: #{mlp_forward.1} parent=0 // pred_check_branch
    %15 = sbr.rel (0) target = $region13
  $region12: #{mlp_forward.1} parent=0 // pred_region
    _
  $region13: #{mlp_forward.1} parent=0 // pred_fallthru
    _
  %v16 = vld [vmem:[%s0] sm:$0xff]
  %v17 = vld [vmem:[%s0 + $0x8] sm:$0xff]
  %v18 = vld [vmem:[%s0 + $0x10] sm:$0xff]
  %v19 = vld [vmem:[%s0 + $0x18] sm:$0xff]
  %v20 = vld [vmem:[%s0 + $0x20] sm:$0xff]
  %v21 = vld [vmem:[%s0 + $0x28] sm:$0xff]
  %v22 = vld [vmem:[%s0 + $0x30] sm:$0xff]
  %v23 = vld [vmem:[%s0 + $0x38] sm:$0xff]
  %v24 = vld [vmem:[%s0 + $0x40] sm:$0xff]
  %v25 = vld [vmem:[%s0 + $0x48] sm:$0xff]
  %v26 = vld [vmem:[%s0 + $0x50] sm:$0xff]
  %v27 = vld [vmem:[%s0 + $0x58] sm:$0xff]
  %v28 = vld [vmem:[%s0 + $0x60] sm:$0xff]
  %v29 = vld [vmem:[%s0 + $0x68] sm:$0xff]
  %v30 = vld [vmem:[%s0 + $0x70] sm:$0xff]
  %v31 = vld [vmem:[%s0 + $0x78] sm:$0xff]
  %v32 = vld [vmem:[%s0 + $0x80] sm:$0xff]
  %v33 = vld [vmem:[%s0 + $0x88] sm:$0xff]
  %v34 = vld [vmem:[%s0 + $0x90] sm:$0xff]
  %v35 = vld [vmem:[%s0 + $0x98] sm:$0xff]
  %v36 = vld [vmem:[%s0 + $0xa0] sm:$0xff]
  %v37 = vld [vmem:[%s0 + $0xa8] sm:$0xff]
  %v38 = vld [vmem:[%s0 + $0xb0] sm:$0xff]
  %v39 = vld [vmem:[%s0 + $0xb8] sm:$0xff]
  %v40 = vld [vmem:[%s0 + $0xc0] sm:$0xff]
  %v41 = vld [vmem:[%s0 + $0xc8] sm:$0xff]
  %v42 = vld [vmem:[%s0 + $0xd0] sm:$0xff]
  %v43 = vld [vmem:[%s0 + $0xd8] sm:$0xff]
  %v44 = vld [vmem:[%s0 + $0xe0] sm:$0xff]
  %v45 = vld [vmem:[%s0 + $0xe8] sm:$0xff]
  %v46 = vld [vmem:[%s1] sm:$0xff]
  %v47 = vld [vmem:[%s1 + $0x8] sm:$0xff]
  %v48 = vld [vmem:[%s1 + $0x10] sm:$0xff]
  %v49 = vld [vmem:[%s1 + $0x18] sm:$0xff]
  %v50 = vld [vmem:[%s1 + $0x20] sm:$0xff]
  %v51 = vld [vmem:[%s1 + $0x28] sm:$0xff]
  %v52 = vld [vmem:[%s1 + $0x30] sm:$0xff]
  %v53 = vld [vmem:[%s1 + $0x38] sm:$0xff]
  %v54 = vld [vmem:[%s1 + $0x40] sm:$0xff]
  %v55 = vld [vmem:[%s1 + $0x48] sm:$0xff]
  %v56 = vld [vmem:[%s1 + $0x50] sm:$0xff]
  %v57 = vld [vmem:[%s1 + $0x58] sm:$0xff]
  %v58 = vld [vmem:[%s1 + $0x60] sm:$0xff]
  %v59 = vld [vmem:[%s1 + $0x68] sm:$0xff]
  %v60 = vld [vmem:[%s1 + $0x70] sm:$0xff]
  %v61 = vld [vmem:[%s1 + $0x78] sm:$0xff]
  %v62 = vld [vmem:[%s1 + $0x80] sm:$0xff]
  %v63 = vld [vmem:[%s1 + $0x88] sm:$0xff]
  %v64 = vld [vmem:[%s1 + $0x90] sm:$0xff]
  %v65 = vld [vmem:[%s1 + $0x98] sm:$0xff]
  %v66 = vld [vmem:[%s1 + $0xa0] sm:$0xff]
  %v67 = vld [vmem:[%s1 + $0xa8] sm:$0xff]
  %v68 = vld [vmem:[%s1 + $0xb0] sm:$0xff]
  %v69 = vld [vmem:[%s1 + $0xb8] sm:$0xff]
  %v70 = vld [vmem:[%s1 + $0xc0] sm:$0xff]
  %v71 = vld [vmem:[%s1 + $0xc8] sm:$0xff]
  %v72 = vld [vmem:[%s1 + $0xd0] sm:$0xff]
  %v73 = vld [vmem:[%s1 + $0xd8] sm:$0xff]
  %v74 = vld [vmem:[%s1 + $0xe0] sm:$0xff]
  %v75 = vld [vmem:[%s1 + $0xe8] sm:$0xff]
  %v76 = vld [vmem:[%s1 + $0xf0] sm:$0xff]
  %v77 = vld [vmem:[%s1 + $0xf8] sm:$0xff]
  %v78 = vld [vmem:[%s1 + $0x100] sm:$0xff]
  %v79 = vld [vmem:[%s1 + $0x108] sm:$0xff]
  %v80 = vld [vmem:[%s1 + $0x110] sm:$0xff]
  %v81 = vld [vmem:[%s1 + $0x118] sm:$0xff]
  %v82 = vld [vmem:[%s1 + $0x120] sm:$0xff]
  %v83 = vld [vmem:[%s1 + $0x128] sm:$0xff]
  %v84 = vld [vmem:[%s1 + $0x130] sm:$0xff]
  %v85 = vld [vmem:[%s1 + $0x138] sm:$0xff]
  %v86 = vld [vmem:[%s1 + $0x140] sm:$0xff]
  %v87 = vld [vmem:[%s1 + $0x148] sm:$0xff]
  %v88 = vld [vmem:[%s1 + $0x150] sm:$0xff]
  %v89 = vld [vmem:[%s1 + $0x158] sm:$0xff]
  %v90 = vld [vmem:[%s1 + $0x160] sm:$0xff]
  %v91 = vld [vmem:[%s1 + $0x168] sm:$0xff]
  %v92 = vld [vmem:[%s1 + $0x170] sm:$0xff]
  %v93 = vld [vmem:[%s1 + $0x178] sm:$0xff]
  %v94 = vld [vmem:[%s1 + $0x180] sm:$0xff]
  %v95 = vld [vmem:[%s1 + $0x188] sm:$0xff]
  %v96 = vld [vmem:[%s1 + $0x190] sm:$0xff]
  %v97 = vld [vmem:[%s1 + $0x198] sm:$0xff]
  %v98 = vld [vmem:[%s1 + $0x1a0] sm:$0xff]
  %v99 = vld [vmem:[%s1 + $0x1a8] sm:$0xff]
  %v100 = vld [vmem:[%s1 + $0x1b0] sm:$0xff]
  %v101 = vld [vmem:[%s1 + $0x1b8] sm:$0xff]
  %v102 = vld [vmem:[%s1 + $0x1c0] sm:$0xff]
  %v103 = vld [vmem:[%s1 + $0x1c8] sm:$0xff]
  %v104 = vld [vmem:[%s1 + $0x1d0] sm:$0xff]
  %v105 = vld [vmem:[%s1 + $0x1d8] sm:$0xff]
  %v106 = vld [vmem:[%s1 + $0x1e0] sm:$0xff]
  %v107 = vld [vmem:[%s1 + $0x1e8] sm:$0xff]
  %v108 = vld [vmem:[%s1 + $0x1f0] sm:$0xff]
  %v109 = vld [vmem:[%s1 + $0x1f8] sm:$0xff]
  %v110 = vld [vmem:[%s1 + $0x200] sm:$0xff]
  %v111 = vld [vmem:[%s1 + $0x208] sm:$0xff]
  %v112 = vld [vmem:[%s1 + $0x210] sm:$0xff]
  %v113 = vld [vmem:[%s1 + $0x218] sm:$0xff]
  %v114 = vld [vmem:[%s1 + $0x220] sm:$0xff]
  %v115 = vld [vmem:[%s1 + $0x228] sm:$0xff]
  %v116 = vld [vmem:[%s1 + $0x230] sm:$0xff]
  %v117 = vld [vmem:[%s1 + $0x238] sm:$0xff]
  %v118 = vld [vmem:[%s1 + $0x240] sm:$0xff]
  %v119 = vld [vmem:[%s1 + $0x248] sm:$0xff]
  %v120 = vld [vmem:[%s1 + $0x250] sm:$0xff]
  %v121 = vld [vmem:[%s1 + $0x258] sm:$0xff]
  %v122 = vld [vmem:[%s1 + $0x260] sm:$0xff]
  %v123 = vld [vmem:[%s1 + $0x268] sm:$0xff]
  %v124 = vld [vmem:[%s1 + $0x270] sm:$0xff]
  %v125 = vld [vmem:[%s1 + $0x278] sm:$0xff]
  %v126 = vld [vmem:[%s1 + $0x280] sm:$0xff]
  %v127 = vld [vmem:[%s1 + $0x288] sm:$0xff]
  %v128 = vld [vmem:[%s1 + $0x290] sm:$0xff]
  %v129 = vld [vmem:[%s1 + $0x298] sm:$0xff]
  %v130 = vld [vmem:[%s1 + $0x2a0] sm:$0xff]
  %v131 = vld [vmem:[%s1 + $0x2a8] sm:$0xff]
  %v132 = vld [vmem:[%s1 + $0x2b0] sm:$0xff]
  %v133 = vld [vmem:[%s1 + $0x2b8] sm:$0xff]
  %v134 = vld [vmem:[%s1 + $0x2c0] sm:$0xff]
  %v135 = vld [vmem:[%s1 + $0x2c8] sm:$0xff]
  %v136 = vld [vmem:[%s1 + $0x2d0] sm:$0xff]
  %v137 = vld [vmem:[%s1 + $0x2d8] sm:$0xff]
  %v138 = vld [vmem:[%s1 + $0x2e0] sm:$0xff]
  %v139 = vld [vmem:[%s1 + $0x2e8] sm:$0xff]
  %v140 = vld [vmem:[%s1 + $0x2f0] sm:$0xff]
  %v141 = vld [vmem:[%s1 + $0x2f8] sm:$0xff]
  %v142 = vld [vmem:[#allocation2] sm:$0x1]
  %v144 = vlaneseq
  %v145 = vshrl.u32 %v144, 7
  %v146 = vsub.s32 0, %v145
  %v147 = vrot.slane %v142, %v146
  %149 = vmatprep.subr.mxu0 0.0
  %150 = vmatpush1.msra.mxu0 %v46
  %151 = vmatprep.subr.mxu0 0.0
  %152 = vmatpush1.msra.mxu0 %v47
  %153 = vmatprep.subr.mxu0 0.0
  %154 = vmatpush1.msra.mxu0 %v48
  %155 = vmatprep.subr.mxu0 0.0
  %156 = vmatpush1.msra.mxu0 %v49
  %157 = vmatprep.subr.mxu0 0.0
  %158 = vmatpush1.msra.mxu0 %v50
  %159 = vmatprep.subr.mxu0 0.0
  %160 = vmatpush1.msra.mxu0 %v51
  %161 = vmatprep.subr.mxu0 0.0
  %162 = vmatpush1.msra.mxu0 %v52
  %163 = vmatprep.subr.mxu0 0.0
  %164 = vmatpush1.msra.mxu0 %v53
  %165 = vmatprep.subr.mxu0 0.0
  %166 = vmatpush1.msra.mxu0 %v54
  %167 = vmatprep.subr.mxu0 0.0
  %168 = vmatpush1.msra.mxu0 %v55
  %169 = vmatprep.subr.mxu0 0.0
  %170 = vmatpush1.msra.mxu0 %v56
  %171 = vmatprep.subr.mxu0 0.0
  %172 = vmatpush1.msra.mxu0 %v57
  %173 = vmatprep.subr.mxu0 0.0
  %174 = vmatpush1.msra.mxu0 %v58
  %175 = vmatprep.subr.mxu0 0.0
  %176 = vmatpush1.msra.mxu0 %v59
  %177 = vmatprep.subr.mxu0 0.0
  %178 = vmatpush1.msra.mxu0 %v60
  %179 = vmatprep.subr.mxu0 0.0
  %180 = vmatpush1.msra.mxu0 %v61
  %181 = vmatprep.subr.mxu0 0.0
  %182 = vmatpush1.msra.mxu0 %v62
  %183 = vmatprep.subr.mxu0 0.0
  %184 = vmatpush1.msra.mxu0 %v63
  %185 = vmatprep.subr.mxu0 0.0
  %186 = vmatpush1.msra.mxu0 %v64
  %187 = vmatprep.subr.mxu0 0.0
  %188 = vmatpush1.msra.mxu0 %v65
  %189 = vmatprep.subr.mxu0 0.0
  %190 = vmatpush1.msra.mxu0 %v66
  %191 = vmatprep.subr.mxu0 0.0
  %192 = vmatpush1.msra.mxu0 %v67
  %193 = vmatprep.subr.mxu0 0.0
  %194 = vmatpush1.msra.mxu0 %v68
  %195 = vmatprep.subr.mxu0 0.0
  %196 = vmatpush1.msra.mxu0 %v69
  %197 = vmatprep.subr.mxu0 0.0
  %198 = vmatpush1.msra.mxu0 %v70
  %199 = vmatprep.subr.mxu0 0.0
  %200 = vmatpush1.msra.mxu0 %v71
  %201 = vmatprep.subr.mxu0 0.0
  %202 = vmatpush1.msra.mxu0 %v72
  %203 = vmatprep.subr.mxu0 0.0
  %204 = vmatpush1.msra.mxu0 %v73
  %205 = vmatprep.subr.mxu0 0.0
  %206 = vmatpush1.msra.mxu0 %v74
  %207 = vmatprep.subr.mxu0 0.0
  %208 = vmatpush1.msra.mxu0 %v75
  %209 = vmatprep.subr.mxu0 0.0
  %210 = vmatpush1.msra.mxu0 %v76
  %211 = vmatprep.subr.mxu0 0.0
  %212 = vmatpush1.msra.mxu0 %v77
  %213 = vmatprep.mubr.f32.mxu0 %v17
  %214 = vmatmul.mubr.f32.gmra.mrb[0].mxu0 %v16
  %v215 = vpop.f32.mrb[0].mxu0
  %v216 = vadd.f32 %v147, %v215
  %v217 = vpop.f32.mrb[0].mxu0
  %218 = vmatprep.mubr.f32.mxu0 %v23
  %219 = vmatmul.mubr.f32.gmra.mrb[0].mxu0 %v22
  %v220 = vpop.f32.mrb[0].mxu0
  %v221 = vadd.f32 %v147, %v220
  %v222 = vpop.f32.mrb[0].mxu0
  %223 = vmatprep.mubr.f32.mxu0 %v29
  %224 = vmatmul.mubr.f32.gmra.mrb[0].mxu0 %v28
  %v225 = vpop.f32.mrb[0].mxu0
  %v226 = vadd.f32 %v147, %v225
  %v227 = vpop.f32.mrb[0].mxu0
  %228 = vmatprep.mubr.f32.mxu0 %v35
  %229 = vmatmul.mubr.f32.gmra.mrb[0].mxu0 %v34
  %v230 = vpop.f32.mrb[0].mxu0
  %v231 = vadd.f32 %v147, %v230
  %v232 = vpop.f32.mrb[0].mxu0
  %233 = vmatprep.mubr.f32.mxu0 %v41
  %234 = vmatmul.mubr.f32.gmra.mrb[0].mxu0 %v40
  %v235 = vpop.f32.mrb[0].mxu0
  %v236 = vadd.f32 %v147, %v235
  %v237 = vpop.f32.mrb[0].mxu0
  %238 = vdwg.mxu0
  %239 = vmatprep.subr.mxu0 0.0
  %240 = vmatpush1.msra.mxu0 %v78
  %241 = vmatprep.subr.mxu0 0.0
  %242 = vmatpush1.msra.mxu0 %v79
  %243 = vmatprep.subr.mxu0 0.0
  %244 = vmatpush1.msra.mxu0 %v80
  %245 = vmatprep.subr.mxu0 0.0
  %246 = vmatpush1.msra.mxu0 %v81
  %247 = vmatprep.subr.mxu0 0.0
  %248 = vmatpush1.msra.mxu0 %v82
  %249 = vmatprep.subr.mxu0 0.0
  %250 = vmatpush1.msra.mxu0 %v83
  %251 = vmatprep.subr.mxu0 0.0
  %252 = vmatpush1.msra.mxu0 %v84
  %253 = vmatprep.subr.mxu0 0.0
  %254 = vmatpush1.msra.mxu0 %v85
  %255 = vmatprep.subr.mxu0 0.0
  %256 = vmatpush1.msra.mxu0 %v86
  %257 = vmatprep.subr.mxu0 0.0
  %258 = vmatpush1.msra.mxu0 %v87
  %259 = vmatprep.subr.mxu0 0.0
  %260 = vmatpush1.msra.mxu0 %v88
  %261 = vmatprep.subr.mxu0 0.0
  %262 = vmatpush1.msra.mxu0 %v89
  %263 = vmatprep.subr.mxu0 0.0
  %264 = vmatpush1.msra.mxu0 %v90
  %265 = vmatprep.subr.mxu0 0.0
  %266 = vmatpush1.msra.mxu0 %v91
  %267 = vmatprep.subr.mxu0 0.0
  %268 = vmatpush1.msra.mxu0 %v92
  %269 = vmatprep.subr.mxu0 0.0
  %270 = vmatpush1.msra.mxu0 %v93
  %271 = vmatprep.subr.mxu0 0.0
  %272 = vmatpush1.msra.mxu0 %v94
  %273 = vmatprep.subr.mxu0 0.0
  %274 = vmatpush1.msra.mxu0 %v95
  %275 = vmatprep.subr.mxu0 0.0
  %276 = vmatpush1.msra.mxu0 %v96
  %277 = vmatprep.subr.mxu0 0.0
  %278 = vmatpush1.msra.mxu0 %v97
  %279 = vmatprep.subr.mxu0 0.0
  %280 = vmatpush1.msra.mxu0 %v98
  %281 = vmatprep.subr.mxu0 0.0
  %282 = vmatpush1.msra.mxu0 %v99
  %283 = vmatprep.subr.mxu0 0.0
  %284 = vmatpush1.msra.mxu0 %v100
  %285 = vmatprep.subr.mxu0 0.0
  %286 = vmatpush1.msra.mxu0 %v101
  %287 = vmatprep.subr.mxu0 0.0
  %288 = vmatpush1.msra.mxu0 %v102
  %289 = vmatprep.subr.mxu0 0.0
  %290 = vmatpush1.msra.mxu0 %v103
  %291 = vmatprep.subr.mxu0 0.0
  %292 = vmatpush1.msra.mxu0 %v104
  %293 = vmatprep.subr.mxu0 0.0
  %294 = vmatpush1.msra.mxu0 %v105
  %295 = vmatprep.subr.mxu0 0.0
  %296 = vmatpush1.msra.mxu0 %v106
  %297 = vmatprep.subr.mxu0 0.0
  %298 = vmatpush1.msra.mxu0 %v107
  %299 = vmatprep.subr.mxu0 0.0
  %300 = vmatpush1.msra.mxu0 %v108
  %301 = vmatprep.subr.mxu0 0.0
  %302 = vmatpush1.msra.mxu0 %v109
  %303 = vmatprep.mubr.f32.mxu0 %v19
  %304 = vmatmul.mubr.f32.gmra.mrb[0].mxu0 %v18
  %v305 = vpop.f32.mrb[0].mxu0
  %v306 = vadd.f32 %v216, %v305
  %v307 = vpop.f32.mrb[0].mxu0
  %308 = vmatprep.mubr.f32.mxu0 %v25
  %309 = vmatmul.mubr.f32.gmra.mrb[0].mxu0 %v24
  %v310 = vpop.f32.mrb[0].mxu0
  %v311 = vadd.f32 %v221, %v310
  %v312 = vpop.f32.mrb[0].mxu0
  %313 = vmatprep.mubr.f32.mxu0 %v31
  %314 = vmatmul.mubr.f32.gmra.mrb[0].mxu0 %v30
  %v315 = vpop.f32.mrb[0].mxu0
  %v316 = vadd.f32 %v226, %v315
  %v317 = vpop.f32.mrb[0].mxu0
  %318 = vmatprep.mubr.f32.mxu0 %v37
  %319 = vmatmul.mubr.f32.gmra.mrb[0].mxu0 %v36
  %v320 = vpop.f32.mrb[0].mxu0
  %v321 = vadd.f32 %v231, %v320
  %v322 = vpop.f32.mrb[0].mxu0
  %323 = vmatprep.mubr.f32.mxu0 %v43
  %324 = vmatmul.mubr.f32.gmra.mrb[0].mxu0 %v42
  %v325 = vpop.f32.mrb[0].mxu0
  %v326 = vadd.f32 %v236, %v325
  %v327 = vpop.f32.mrb[0].mxu0
  %328 = vdwg.mxu0
  %329 = vmatprep.subr.mxu0 0.0
  %330 = vmatpush1.msra.mxu0 %v110
  %331 = vmatprep.subr.mxu0 0.0
  %332 = vmatpush1.msra.mxu0 %v111
  %333 = vmatprep.subr.mxu0 0.0
  %334 = vmatpush1.msra.mxu0 %v112
  %335 = vmatprep.subr.mxu0 0.0
  %336 = vmatpush1.msra.mxu0 %v113
  %337 = vmatprep.subr.mxu0 0.0
  %338 = vmatpush1.msra.mxu0 %v114
  %339 = vmatprep.subr.mxu0 0.0
  %340 = vmatpush1.msra.mxu0 %v115
  %341 = vmatprep.subr.mxu0 0.0
  %342 = vmatpush1.msra.mxu0 %v116
  %343 = vmatprep.subr.mxu0 0.0
  %344 = vmatpush1.msra.mxu0 %v117
  %345 = vmatprep.subr.mxu0 0.0
  %346 = vmatpush1.msra.mxu0 %v118
  %347 = vmatprep.subr.mxu0 0.0
  %348 = vmatpush1.msra.mxu0 %v119
  %349 = vmatprep.subr.mxu0 0.0
  %350 = vmatpush1.msra.mxu0 %v120
  %351 = vmatprep.subr.mxu0 0.0
  %352 = vmatpush1.msra.mxu0 %v121
  %353 = vmatprep.subr.mxu0 0.0
  %354 = vmatpush1.msra.mxu0 %v122
  %355 = vmatprep.subr.mxu0 0.0
  %356 = vmatpush1.msra.mxu0 %v123
  %357 = vmatprep.subr.mxu0 0.0
  %358 = vmatpush1.msra.mxu0 %v124
  %359 = vmatprep.subr.mxu0 0.0
  %360 = vmatpush1.msra.mxu0 %v125
  %361 = vmatprep.subr.mxu0 0.0
  %362 = vmatpush1.msra.mxu0 %v126
  %363 = vmatprep.subr.mxu0 0.0
  %364 = vmatpush1.msra.mxu0 %v127
  %365 = vmatprep.subr.mxu0 0.0
  %366 = vmatpush1.msra.mxu0 %v128
  %367 = vmatprep.subr.mxu0 0.0
  %368 = vmatpush1.msra.mxu0 %v129
  %369 = vmatprep.subr.mxu0 0.0
  %370 = vmatpush1.msra.mxu0 %v130
  %371 = vmatprep.subr.mxu0 0.0
  %372 = vmatpush1.msra.mxu0 %v131
  %373 = vmatprep.subr.mxu0 0.0
  %374 = vmatpush1.msra.mxu0 %v132
  %375 = vmatprep.subr.mxu0 0.0
  %376 = vmatpush1.msra.mxu0 %v133
  %377 = vmatprep.subr.mxu0 0.0
  %378 = vmatpush1.msra.mxu0 %v134
  %379 = vmatprep.subr.mxu0 0.0
  %380 = vmatpush1.msra.mxu0 %v135
  %381 = vmatprep.subr.mxu0 0.0
  %382 = vmatpush1.msra.mxu0 %v136
  %383 = vmatprep.subr.mxu0 0.0
  %384 = vmatpush1.msra.mxu0 %v137
  %385 = vmatprep.subr.mxu0 0.0
  %386 = vmatpush1.msra.mxu0 %v138
  %387 = vmatprep.subr.mxu0 0.0
  %388 = vmatpush1.msra.mxu0 %v139
  %389 = vmatprep.subr.mxu0 0.0
  %390 = vmatpush1.msra.mxu0 %v140
  %391 = vmatprep.subr.mxu0 0.0
  %392 = vmatpush1.msra.mxu0 %v141
  %393 = vmatprep.mubr.f32.mxu0 %v21
  %394 = vmatmul.mubr.f32.gmra.mrb[0].mxu0 %v20
  %v395 = vpop.f32.mrb[0].mxu0
  %v396 = vadd.f32 %v306, %v395
  %v397 = vpop.f32.mrb[0].mxu0
  %398 = vmatprep.mubr.f32.mxu0 %v27
  %399 = vmatmul.mubr.f32.gmra.mrb[0].mxu0 %v26
  %v400 = vpop.f32.mrb[0].mxu0
  %v401 = vadd.f32 %v311, %v400
  %v402 = vpop.f32.mrb[0].mxu0
  %403 = vmatprep.mubr.f32.mxu0 %v33
  %404 = vmatmul.mubr.f32.gmra.mrb[0].mxu0 %v32
  %v405 = vpop.f32.mrb[0].mxu0
  %v406 = vadd.f32 %v316, %v405
  %v407 = vpop.f32.mrb[0].mxu0
  %408 = vmatprep.mubr.f32.mxu0 %v39
  %409 = vmatmul.mubr.f32.gmra.mrb[0].mxu0 %v38
  %v410 = vpop.f32.mrb[0].mxu0
  %v411 = vadd.f32 %v321, %v410
  %v412 = vpop.f32.mrb[0].mxu0
  %413 = vmatprep.mubr.f32.mxu0 %v45
  %414 = vmatmul.mubr.f32.gmra.mrb[0].mxu0 %v44
  %v415 = vpop.f32.mrb[0].mxu0
  %v416 = vadd.f32 %v326, %v415
  %v417 = vpop.f32.mrb[0].mxu0
  %418 = vdwg.mxu0
  %vm419 = vcmask 7168
  %420 = vst.msk [vmem:[%s3] sm:$0xff] %vm419, %v396
  %421 = vst.msk [vmem:[%s3 + $0x8] sm:$0xff] %vm419, %v401
  %422 = vst.msk [vmem:[%s3 + $0x10] sm:$0xff] %vm419, %v406
  %423 = vst.msk [vmem:[%s3 + $0x18] sm:$0xff] %vm419, %v411
  %424 = vst.msk [vmem:[%s3 + $0x20] sm:$0xff] %vm419, %v416
  // Predicated region
  $region14: #{mlp_forward.1} parent=0 // pred_check
    _
  $region15: #{mlp_forward.1} parent=0 // pred_check_branch
    %426 = sbr.rel (0) target = $region17
  $region16: #{mlp_forward.1} parent=0 // pred_region
    _
  $region17: #{mlp_forward.1} parent=0 // pred_fallthru
    _
  // Predicated region
  $region18: #{mlp_forward.1} parent=0 // pred_check
    _
  $region19: #{mlp_forward.1} parent=0 // pred_check_branch
    %428 = sbr.rel (0) target = $region21
  $region20: #{mlp_forward.1} parent=0 // pred_region
    _
  $region21: #{mlp_forward.1} parent=0 // pred_fallthru
    _

</llo_original>
